<compile_context>
chip_gen: v6e
topology: v6e:2x2x1
jax: 0.10.0
libtpu: 0.0.40
codegen_flags: <defaults>
</compile_context>

<pallas_src>
import functools

import jax
import jax.numpy as jnp
from jax import lax
from jax.experimental import pallas as pl
from jax.experimental.pallas import tpu as pltpu


# ----------------------------------------------------------------------------
# Pallas kernel: full ResidualAttMod forward for one lane-chunk of images.
#   BasicBlock(conv3x3 -> BN -> ReLU -> conv3x3 -> BN) + identity -> ReLU
#   -> bn1 -> ReLU -> conv1x1 -> bn2 -> ELU + 1 -> * mask
# ----------------------------------------------------------------------------
def _residual_att_kernel(x_ref, w1_ref, w2_ref, w3_ref, bnc_ref, bn2b_ref,
                         masks_ref, out_ref, *, W):
    # x_ref:     (Cp, L)     channel-major; L = Nb*H*W images concatenated on lanes
    # w1/w2_ref: (Cp, 9*Cp)  fused 3x3 weights (BN scale folded), col = k*Cp + ci
    # w3_ref:    (Cout, Cp)  1x1 conv weights (bn2 scale folded)
    # bnc_ref:   (Cp, 4)     packed [bnA_b | bnB_b | bn1_s | bn1_b]
    # bn2b_ref:  (Cout, 1)
    # masks_ref: (10, L)     rows 0..8: per-tap validity masks, row 9: attention mask
    L = x_ref.shape[1]

    x = x_ref[...]                                     # (Cp, L) f32
    masks = masks_ref[...]                             # (10, L)
    tap_m = [masks[k:k + 1, :] for k in range(9)]      # hoisted: reused by both convs
    att_m = masks[9:10, :]

    def im2col(v):
        # (Cp, L) -> (9*Cp, L) as a value (no scratch).  Shifts use the XLU
        # (pltpu.roll) on the flat lane axis; the precomputed boundary mask
        # zeroes every element the cyclic roll would read out-of-image.
        taps = []
        for k in range(9):
            oy, ox = k // 3 - 1, k % 3 - 1
            s = oy * W + ox                            # flat spatial shift
            sh = v if s == 0 else pltpu.roll(v, (-s) % L, 1)   # sh[p] = v[(p+s) % L]
            taps.append(sh * tap_m[k])
        return jnp.concatenate(taps, axis=0)           # 8-row pieces: pure vreg stacking

    bnc = bnc_ref[...]
    bnA_b, bnB_b = bnc[:, 0:1], bnc[:, 1:2]
    bn1_s, bn1_b = bnc[:, 2:3], bnc[:, 3:4]

    # ---- BasicBlock conv #1: fused 3x3 im2col matmul (+folded BN scale) ----
    h1 = jnp.dot(w1_ref[...], im2col(x), preferred_element_type=jnp.float32)
    h1 = jnp.maximum(h1 + bnA_b, 0.0)

    # ---- BasicBlock conv #2 -> BN bias, identity shortcut, ReLU ----
    h2 = jnp.dot(w2_ref[...], im2col(h1), preferred_element_type=jnp.float32)
    r = jnp.maximum(h2 + bnB_b + x, 0.0)

    # ---- bn1 + ReLU ----
    r = jnp.maximum(r * bn1_s + bn1_b, 0.0)

    # ---- 1x1 conv (pointwise matmul, bn2 scale folded) + bn2 bias ----
    z = jnp.dot(w3_ref[...], r, preferred_element_type=jnp.float32) + bn2b_ref[...]

    # ---- ELU(z) + 1 == where(z > 0, z + 1, exp(z)), then attention mask ----
    z = jnp.where(z > 0.0, z + 1.0, jnp.exp(z))
    out_ref[...] = (z * att_m).astype(out_ref.dtype)


# ----------------------------------------------------------------------------
# Glue / wrapper
# ----------------------------------------------------------------------------
def _nearest_mask(H, W):
    """F.interpolate(mask, (H, W), mode='nearest') of the 24x24 buffer with a
    2-pixel zero border."""
    base = jnp.zeros((24, 24), jnp.float32).at[2:22, 2:22].set(1.0)
    ih = (jnp.arange(H) * 24) // H      # floor(i * 24 / H)
    iw = (jnp.arange(W) * 24) // W
    return base[ih[:, None], iw[None, :]]


def residual_att_mod(x_nchw, params):
    N, Cin, H, W = x_nchw.shape
    Cout = params["w3"].shape[1]
    if Cout == 0:  # num_attentions == 0
        return jnp.ones((N, 1, 1, 1), x_nchw.dtype)
    HW = H * W
    Cp = -(-Cin // 8) * 8               # pad channels to a whole sublane group

    # Two grid steps when possible (one per v7x TensorCore); otherwise one fat
    # step.  Each step gets Nb images concatenated along the lane axis.
    n_steps = 2 if (N >= 2 and N % 2 == 0) else 1
    Nb = N // n_steps
    L = Nb * HW

    # Channel-major, batch-on-lanes slab (tiny transpose, done once by XLA).
    x_f = jnp.pad(x_nchw.astype(jnp.float32),
                  ((0, 0), (0, Cp - Cin), (0, 0), (0, 0)))
    x_cm = jnp.transpose(x_f, (1, 0, 2, 3)).reshape(Cp, N * HW)

    # Fused 3x3 weights (Cp, 9*Cp): column index k*Cp + ci, tap k = dy*3 + dx.
    # BN scales folded into the conv output rows; padded rows/cols are zero.
    def fuse3x3(w9, scale):             # w9: (9, Cin, Cout_conv), scale: (Cout_conv,)
        w = jnp.transpose(w9, (2, 0, 1)) * scale[:, None, None]   # (O, 9, I)
        w = jnp.pad(w, ((0, Cp - w.shape[0]), (0, 0), (0, Cp - w.shape[2])))
        return w.reshape(Cp, 9 * Cp)

    w1f = fuse3x3(params["w1"], params["bnA_s"])
    w2f = fuse3x3(params["w2"], params["bnB_s"])
    w3f = jnp.pad(params["w3"].T * params["bn2_s"][:, None],
                  ((0, 0), (0, Cp - Cin)))                        # (Cout, Cp)

    pad_c = lambda v: jnp.pad(v, (0, Cp - Cin))
    bnc = jnp.stack([pad_c(params["bnA_b"]), pad_c(params["bnB_b"]),
                     pad_c(params["bn1_s"]), pad_c(params["bn1_b"])], axis=1)  # (Cp, 4)
    bn2_b = params["bn2_b"].reshape(Cout, 1)

    # Precomputed per-tap validity masks (== the 3x3 zero padding; also kills
    # roll wrap across image/batch boundaries) + attention mask: (10, L).
    pos = jnp.arange(L) % HW
    row_i, col_i = pos // W, pos % W
    tap_masks = []
    for k in range(9):
        oy, ox = k // 3 - 1, k % 3 - 1
        tap_masks.append(((row_i + oy >= 0) & (row_i + oy < H) &
                          (col_i + ox >= 0) & (col_i + ox < W)).astype(jnp.float32))
    att_mask = jnp.tile(_nearest_mask(H, W).reshape(HW), (Nb,))
    masks = jnp.stack(tap_masks + [att_mask], axis=0)             # (10, L)

    rep = lambda n: (0, 0)
    kernel = functools.partial(_residual_att_kernel, W=W)

    out_cm = pl.pallas_call(
        kernel,
        out_shape=jax.ShapeDtypeStruct((Cout, N * HW), jnp.float32),
        grid=(n_steps,),
        in_specs=[
            pl.BlockSpec((Cp, L), lambda n: (0, n)),   # x (channel-major lane chunk)
            pl.BlockSpec((Cp, 9 * Cp), rep),           # w1 fused (bnA_s folded)
            pl.BlockSpec((Cp, 9 * Cp), rep),           # w2 fused (bnB_s folded)
            pl.BlockSpec((Cout, Cp), rep),             # w3 fused (bn2_s folded)
            pl.BlockSpec((Cp, 4), rep),                # packed [bnA_b|bnB_b|bn1_s|bn1_b]
            pl.BlockSpec((Cout, 1), rep),              # bn2 bias
            pl.BlockSpec((10, L), rep),                # 9 tap masks + attention mask
        ],
        out_specs=pl.BlockSpec((Cout, L), lambda n: (0, n)),
        compiler_params=pltpu.CompilerParams(dimension_semantics=("parallel",)),
    )(x_cm, w1f, w2f, w3f, bnc, bn2_b, masks)

    # Note on scaling: per-step VMEM footprint is only tens of KiB (x/out/mask
    # blocks x2 buffers + weights), far under even v7x's 64 MiB; if H*W or C
    # ever grow, tile the flat lane axis first (keep multiples of 128) and
    # budget blocks against 64 MiB counting double buffers.
    return jnp.transpose(out_cm.reshape(Cout, N, H, W), (1, 0, 2, 3))  # -> NCHW


# ----------------------------------------------------------------------------
# Deterministic parameter initialization (synthetic, matches module shapes)
# ----------------------------------------------------------------------------
def _fold_bn(kg, kb, km, kv, C, eps=1e-5):
    gamma = 1.0 + 0.1 * jax.random.normal(kg, (C,), jnp.float32)
    beta = 0.1 * jax.random.normal(kb, (C,), jnp.float32)
    mean = 0.1 * jax.random.normal(km, (C,), jnp.float32)
    var = jnp.abs(jax.random.normal(kv, (C,), jnp.float32)) + 0.5
    s = gamma / jnp.sqrt(var + eps)
    b = beta - mean * s
    return s, b


def init_params(key, in_channels, out_channels):
    ks = jax.random.split(key, 19)
    p = {}
    # conv3x3 weights stored as (9, Cin, Cout) with tap index k = dy*3 + dx
    p["w1"] = 0.1 * jax.random.normal(ks[0], (9, in_channels, in_channels), jnp.float32)
    p["w2"] = 0.1 * jax.random.normal(ks[1], (9, in_channels, in_channels), jnp.float32)
    p["w3"] = 0.1 * jax.random.normal(ks[2], (in_channels, out_channels), jnp.float32)
    p["bnA_s"], p["bnA_b"] = _fold_bn(ks[3], ks[4], ks[5], ks[6], in_channels)
    p["bnB_s"], p["bnB_b"] = _fold_bn(ks[7], ks[8], ks[9], ks[10], in_channels)
    p["bn1_s"], p["bn1_b"] = _fold_bn(ks[11], ks[12], ks[13], ks[14], in_channels)
    p["bn2_s"], p["bn2_b"] = _fold_bn(ks[15], ks[16], ks[17], ks[18], out_channels)
    return p


# ----------------------------------------------------------------------------
# Pure-JAX reference (for verification)
# ----------------------------------------------------------------------------
def ref_forward(x_nchw, params):
    x = jnp.transpose(x_nchw, (0, 2, 3, 1)).astype(jnp.float32)
    H, W = x.shape[1], x.shape[2]

    def conv3(xin, w9):
        w = w9.reshape(3, 3, w9.shape[1], w9.shape[2])
        return lax.conv_general_dilated(
            xin, w, (1, 1), "SAME",
            dimension_numbers=("NHWC", "HWIO", "NHWC"))

    h = conv3(x, params["w1"]) * params["bnA_s"] + params["bnA_b"]
    h = jnp.maximum(h, 0.0)
    h2 = conv3(h, params["w2"]) * params["bnB_s"] + params["bnB_b"]
    r = jnp.maximum(h2 + x, 0.0)
    r = jnp.maximum(r * params["bn1_s"] + params["bn1_b"], 0.0)
    z = jnp.einsum("nhwc,cd->nhwd", r, params["w3"])
    z = z * params["bn2_s"] + params["bn2_b"]
    z = jnp.where(z > 0.0, z + 1.0, jnp.exp(z))
    z = z * _nearest_mask(H, W)[None, :, :, None]
    return jnp.transpose(z, (0, 3, 1, 2))


if __name__ == "__main__":
    key = jax.random.PRNGKey(0)
    kx, kp = jax.random.split(key)

    N, Cin, Cout, H, W = 2, 4, 8, 16, 16
    x = jax.random.normal(kx, (N, Cin, H, W), jnp.float32)
    params = init_params(kp, Cin, Cout)

    out = jax.block_until_ready(residual_att_mod(x, params))
    assert out.shape == (N, Cout, H, W)

    ref = jax.block_until_ready(ref_forward(x, params))
    max_err = float(jnp.max(jnp.abs(out - ref)))
    assert max_err < 1e-3, f"mismatch vs reference: {max_err}"

    print("KERNEL_OK")
</pallas_src>

<mosaic_0001>
module attributes {stable_mosaic.version = 11 : i64} {
  func.func @_residual_att_kernel(%arg0: i32, %arg1: memref<8x256xf32, #tpu.memory_space<vmem>>, %arg2: memref<8x72xf32, #tpu.memory_space<vmem>>, %arg3: memref<8x72xf32, #tpu.memory_space<vmem>>, %arg4: memref<8x8xf32, #tpu.memory_space<vmem>>, %arg5: memref<8x4xf32, #tpu.memory_space<vmem>>, %arg6: memref<8x1xf32, #tpu.memory_space<vmem>>, %arg7: memref<10x256xf32, #tpu.memory_space<vmem>>, %arg8: memref<8x256xf32, #tpu.memory_space<vmem>>) attributes {dimension_semantics = [#tpu.dimension_semantics<parallel>], iteration_bounds = array<i64: 2>, scalar_prefetch = 0 : i64, scratch_operands = 0 : i64, tpu.core_type = #tpu.core_type<tc>, window_params = [{transform_indices = @transform_0, window_bounds = array<i64: 8, 256>}, {pipeline_mode = #tpu.pipeline_mode<synchronous>, transform_indices = @transform_1, window_bounds = array<i64: 8, 72>}, {pipeline_mode = #tpu.pipeline_mode<synchronous>, transform_indices = @transform_2, window_bounds = array<i64: 8, 72>}, {pipeline_mode = #tpu.pipeline_mode<synchronous>, transform_indices = @transform_3, window_bounds = array<i64: 8, 8>}, {pipeline_mode = #tpu.pipeline_mode<synchronous>, transform_indices = @transform_4, window_bounds = array<i64: 8, 4>}, {pipeline_mode = #tpu.pipeline_mode<synchronous>, transform_indices = @transform_5, window_bounds = array<i64: 8, 1>}, {pipeline_mode = #tpu.pipeline_mode<synchronous>, transform_indices = @transform_6, window_bounds = array<i64: 10, 256>}, {transform_indices = @transform_7, window_bounds = array<i64: 8, 256>}]} {
    %c0 = arith.constant 0 : index
    %c0_0 = arith.constant 0 : index
    %0 = vector.load %arg1[%c0, %c0_0] : memref<8x256xf32, #tpu.memory_space<vmem>>, vector<8x256xf32>
    %c0_1 = arith.constant 0 : index
    %c0_2 = arith.constant 0 : index
    %1 = vector.load %arg7[%c0_1, %c0_2] : memref<10x256xf32, #tpu.memory_space<vmem>>, vector<10x256xf32>
    %2 = vector.extract_strided_slice %1 {offsets = [0, 0], sizes = [1, 256], strides = [1, 1]} : vector<10x256xf32> to vector<1x256xf32>
    %3 = vector.extract_strided_slice %1 {offsets = [1, 0], sizes = [1, 256], strides = [1, 1]} : vector<10x256xf32> to vector<1x256xf32>
    %4 = vector.extract_strided_slice %1 {offsets = [2, 0], sizes = [1, 256], strides = [1, 1]} : vector<10x256xf32> to vector<1x256xf32>
    %5 = vector.extract_strided_slice %1 {offsets = [3, 0], sizes = [1, 256], strides = [1, 1]} : vector<10x256xf32> to vector<1x256xf32>
    %6 = vector.extract_strided_slice %1 {offsets = [4, 0], sizes = [1, 256], strides = [1, 1]} : vector<10x256xf32> to vector<1x256xf32>
    %7 = vector.extract_strided_slice %1 {offsets = [5, 0], sizes = [1, 256], strides = [1, 1]} : vector<10x256xf32> to vector<1x256xf32>
    %8 = vector.extract_strided_slice %1 {offsets = [6, 0], sizes = [1, 256], strides = [1, 1]} : vector<10x256xf32> to vector<1x256xf32>
    %9 = vector.extract_strided_slice %1 {offsets = [7, 0], sizes = [1, 256], strides = [1, 1]} : vector<10x256xf32> to vector<1x256xf32>
    %10 = vector.extract_strided_slice %1 {offsets = [8, 0], sizes = [1, 256], strides = [1, 1]} : vector<10x256xf32> to vector<1x256xf32>
    %11 = vector.extract_strided_slice %1 {offsets = [9, 0], sizes = [1, 256], strides = [1, 1]} : vector<10x256xf32> to vector<1x256xf32>
    %c0_3 = arith.constant 0 : index
    %c0_4 = arith.constant 0 : index
    %12 = vector.load %arg5[%c0_3, %c0_4] : memref<8x4xf32, #tpu.memory_space<vmem>>, vector<8x4xf32>
    %13 = vector.extract_strided_slice %12 {offsets = [0, 0], sizes = [8, 1], strides = [1, 1]} : vector<8x4xf32> to vector<8x1xf32>
    %14 = vector.extract_strided_slice %12 {offsets = [0, 1], sizes = [8, 1], strides = [1, 1]} : vector<8x4xf32> to vector<8x1xf32>
    %15 = vector.extract_strided_slice %12 {offsets = [0, 2], sizes = [8, 1], strides = [1, 1]} : vector<8x4xf32> to vector<8x1xf32>
    %16 = vector.extract_strided_slice %12 {offsets = [0, 3], sizes = [8, 1], strides = [1, 1]} : vector<8x4xf32> to vector<8x1xf32>
    %c0_5 = arith.constant 0 : index
    %c0_6 = arith.constant 0 : index
    %17 = vector.load %arg2[%c0_5, %c0_6] : memref<8x72xf32, #tpu.memory_space<vmem>>, vector<8x72xf32>
    %c17_i32 = arith.constant 17 : i32
    %18 = tpu.dynamic_rotate %0 by %c17_i32 dim 1 : vector<8x256xf32>, i32 -> vector<8x256xf32>
    %19 = vector.broadcast %2 : vector<1x256xf32> to vector<8x256xf32>
    %20 = arith.mulf %18, %19 : vector<8x256xf32>
    %c16_i32 = arith.constant 16 : i32
    %21 = tpu.dynamic_rotate %0 by %c16_i32 dim 1 : vector<8x256xf32>, i32 -> vector<8x256xf32>
    %22 = vector.broadcast %3 : vector<1x256xf32> to vector<8x256xf32>
    %23 = arith.mulf %21, %22 : vector<8x256xf32>
    %c15_i32 = arith.constant 15 : i32
    %24 = tpu.dynamic_rotate %0 by %c15_i32 dim 1 : vector<8x256xf32>, i32 -> vector<8x256xf32>
    %25 = vector.broadcast %4 : vector<1x256xf32> to vector<8x256xf32>
    %26 = arith.mulf %24, %25 : vector<8x256xf32>
    %c1_i32 = arith.constant 1 : i32
    %27 = tpu.dynamic_rotate %0 by %c1_i32 dim 1 : vector<8x256xf32>, i32 -> vector<8x256xf32>
    %28 = vector.broadcast %5 : vector<1x256xf32> to vector<8x256xf32>
    %29 = arith.mulf %27, %28 : vector<8x256xf32>
    %30 = vector.broadcast %6 : vector<1x256xf32> to vector<8x256xf32>
    %31 = arith.mulf %0, %30 : vector<8x256xf32>
    %c255_i32 = arith.constant 255 : i32
    %32 = tpu.dynamic_rotate %0 by %c255_i32 dim 1 : vector<8x256xf32>, i32 -> vector<8x256xf32>
    %33 = vector.broadcast %7 : vector<1x256xf32> to vector<8x256xf32>
    %34 = arith.mulf %32, %33 : vector<8x256xf32>
    %c241_i32 = arith.constant 241 : i32
    %35 = tpu.dynamic_rotate %0 by %c241_i32 dim 1 : vector<8x256xf32>, i32 -> vector<8x256xf32>
    %36 = vector.broadcast %8 : vector<1x256xf32> to vector<8x256xf32>
    %37 = arith.mulf %35, %36 : vector<8x256xf32>
    %c240_i32 = arith.constant 240 : i32
    %38 = tpu.dynamic_rotate %0 by %c240_i32 dim 1 : vector<8x256xf32>, i32 -> vector<8x256xf32>
    %39 = vector.broadcast %9 : vector<1x256xf32> to vector<8x256xf32>
    %40 = arith.mulf %38, %39 : vector<8x256xf32>
    %c239_i32 = arith.constant 239 : i32
    %41 = tpu.dynamic_rotate %0 by %c239_i32 dim 1 : vector<8x256xf32>, i32 -> vector<8x256xf32>
    %42 = vector.broadcast %10 : vector<1x256xf32> to vector<8x256xf32>
    %43 = arith.mulf %41, %42 : vector<8x256xf32>
    %44 = tpu.concatenate %20, %23, %26, %29, %31, %34, %37, %40, %43 in 0 : vector<8x256xf32>, vector<8x256xf32>, vector<8x256xf32>, vector<8x256xf32>, vector<8x256xf32>, vector<8x256xf32>, vector<8x256xf32>, vector<8x256xf32>, vector<8x256xf32> -> vector<72x256xf32>
    %cst = arith.constant dense<0.000000e+00> : vector<8x256xf32>
    %45 = tpu.matmul %17, %44, %cst {dimension_numbers = #tpu.dot_dimension_numbers<[1], [0], [0], [1], [0, 0, 1, 1], [], []>} : vector<8x72xf32>, vector<72x256xf32>, vector<8x256xf32> -> vector<8x256xf32>
    %46 = vector.broadcast %13 : vector<8x1xf32> to vector<8x256xf32>
    %47 = arith.addf %45, %46 : vector<8x256xf32>
    %cst_7 = arith.constant 0.000000e+00 : f32
    %48 = vector.broadcast %cst_7 : f32 to vector<8x256xf32>
    %49 = arith.maximumf %47, %48 : vector<8x256xf32>
    %c0_8 = arith.constant 0 : index
    %c0_9 = arith.constant 0 : index
    %50 = vector.load %arg3[%c0_8, %c0_9] : memref<8x72xf32, #tpu.memory_space<vmem>>, vector<8x72xf32>
    %c17_i32_10 = arith.constant 17 : i32
    %51 = tpu.dynamic_rotate %49 by %c17_i32_10 dim 1 : vector<8x256xf32>, i32 -> vector<8x256xf32>
    %52 = vector.broadcast %2 : vector<1x256xf32> to vector<8x256xf32>
    %53 = arith.mulf %51, %52 : vector<8x256xf32>
    %c16_i32_11 = arith.constant 16 : i32
    %54 = tpu.dynamic_rotate %49 by %c16_i32_11 dim 1 : vector<8x256xf32>, i32 -> vector<8x256xf32>
    %55 = vector.broadcast %3 : vector<1x256xf32> to vector<8x256xf32>
    %56 = arith.mulf %54, %55 : vector<8x256xf32>
    %c15_i32_12 = arith.constant 15 : i32
    %57 = tpu.dynamic_rotate %49 by %c15_i32_12 dim 1 : vector<8x256xf32>, i32 -> vector<8x256xf32>
    %58 = vector.broadcast %4 : vector<1x256xf32> to vector<8x256xf32>
    %59 = arith.mulf %57, %58 : vector<8x256xf32>
    %c1_i32_13 = arith.constant 1 : i32
    %60 = tpu.dynamic_rotate %49 by %c1_i32_13 dim 1 : vector<8x256xf32>, i32 -> vector<8x256xf32>
    %61 = vector.broadcast %5 : vector<1x256xf32> to vector<8x256xf32>
    %62 = arith.mulf %60, %61 : vector<8x256xf32>
    %63 = vector.broadcast %6 : vector<1x256xf32> to vector<8x256xf32>
    %64 = arith.mulf %49, %63 : vector<8x256xf32>
    %c255_i32_14 = arith.constant 255 : i32
    %65 = tpu.dynamic_rotate %49 by %c255_i32_14 dim 1 : vector<8x256xf32>, i32 -> vector<8x256xf32>
    %66 = vector.broadcast %7 : vector<1x256xf32> to vector<8x256xf32>
    %67 = arith.mulf %65, %66 : vector<8x256xf32>
    %c241_i32_15 = arith.constant 241 : i32
    %68 = tpu.dynamic_rotate %49 by %c241_i32_15 dim 1 : vector<8x256xf32>, i32 -> vector<8x256xf32>
    %69 = vector.broadcast %8 : vector<1x256xf32> to vector<8x256xf32>
    %70 = arith.mulf %68, %69 : vector<8x256xf32>
    %c240_i32_16 = arith.constant 240 : i32
    %71 = tpu.dynamic_rotate %49 by %c240_i32_16 dim 1 : vector<8x256xf32>, i32 -> vector<8x256xf32>
    %72 = vector.broadcast %9 : vector<1x256xf32> to vector<8x256xf32>
    %73 = arith.mulf %71, %72 : vector<8x256xf32>
    %c239_i32_17 = arith.constant 239 : i32
    %74 = tpu.dynamic_rotate %49 by %c239_i32_17 dim 1 : vector<8x256xf32>, i32 -> vector<8x256xf32>
    %75 = vector.broadcast %10 : vector<1x256xf32> to vector<8x256xf32>
    %76 = arith.mulf %74, %75 : vector<8x256xf32>
    %77 = tpu.concatenate %53, %56, %59, %62, %64, %67, %70, %73, %76 in 0 : vector<8x256xf32>, vector<8x256xf32>, vector<8x256xf32>, vector<8x256xf32>, vector<8x256xf32>, vector<8x256xf32>, vector<8x256xf32>, vector<8x256xf32>, vector<8x256xf32> -> vector<72x256xf32>
    %cst_18 = arith.constant dense<0.000000e+00> : vector<8x256xf32>
    %78 = tpu.matmul %50, %77, %cst_18 {dimension_numbers = #tpu.dot_dimension_numbers<[1], [0], [0], [1], [0, 0, 1, 1], [], []>} : vector<8x72xf32>, vector<72x256xf32>, vector<8x256xf32> -> vector<8x256xf32>
    %79 = vector.broadcast %14 : vector<8x1xf32> to vector<8x256xf32>
    %80 = arith.addf %78, %79 : vector<8x256xf32>
    %81 = arith.addf %80, %0 : vector<8x256xf32>
    %cst_19 = arith.constant 0.000000e+00 : f32
    %82 = vector.broadcast %cst_19 : f32 to vector<8x256xf32>
    %83 = arith.maximumf %81, %82 : vector<8x256xf32>
    %84 = vector.broadcast %15 : vector<8x1xf32> to vector<8x256xf32>
    %85 = arith.mulf %83, %84 : vector<8x256xf32>
    %86 = vector.broadcast %16 : vector<8x1xf32> to vector<8x256xf32>
    %87 = arith.addf %85, %86 : vector<8x256xf32>
    %cst_20 = arith.constant 0.000000e+00 : f32
    %88 = vector.broadcast %cst_20 : f32 to vector<8x256xf32>
    %89 = arith.maximumf %87, %88 : vector<8x256xf32>
    %c0_21 = arith.constant 0 : index
    %c0_22 = arith.constant 0 : index
    %90 = vector.load %arg4[%c0_21, %c0_22] : memref<8x8xf32, #tpu.memory_space<vmem>>, vector<8x8xf32>
    %cst_23 = arith.constant dense<0.000000e+00> : vector<8x256xf32>
    %91 = tpu.matmul %90, %89, %cst_23 {dimension_numbers = #tpu.dot_dimension_numbers<[1], [0], [0], [1], [0, 0, 1, 1], [], []>} : vector<8x8xf32>, vector<8x256xf32>, vector<8x256xf32> -> vector<8x256xf32>
    %c0_24 = arith.constant 0 : index
    %c0_25 = arith.constant 0 : index
    %92 = vector.load %arg6[%c0_24, %c0_25] : memref<8x1xf32, #tpu.memory_space<vmem>>, vector<8x1xf32>
    %93 = vector.broadcast %92 : vector<8x1xf32> to vector<8x256xf32>
    %94 = arith.addf %91, %93 : vector<8x256xf32>
    %cst_26 = arith.constant 0.000000e+00 : f32
    %95 = vector.broadcast %cst_26 : f32 to vector<8x256xf32>
    %96 = arith.cmpf ogt, %94, %95 : vector<8x256xf32>
    %cst_27 = arith.constant 1.000000e+00 : f32
    %97 = vector.broadcast %cst_27 : f32 to vector<8x256xf32>
    %98 = arith.addf %94, %97 : vector<8x256xf32>
    %99 = math.exp %94 : vector<8x256xf32>
    %100 = arith.select %96, %98, %99 : vector<8x256xi1>, vector<8x256xf32>
    %101 = vector.broadcast %11 : vector<1x256xf32> to vector<8x256xf32>
    %102 = arith.mulf %100, %101 : vector<8x256xf32>
    %c0_28 = arith.constant 0 : index
    %c0_29 = arith.constant 0 : index
    %103 = vector.load %arg8[%c0_28, %c0_29] : memref<8x256xf32, #tpu.memory_space<vmem>>, vector<8x256xf32>
    tpu.vector_store %arg8[%c0_28, %c0_29], %102 {strides = array<i32>} : memref<8x256xf32, #tpu.memory_space<vmem>>, vector<8x256xf32>,
    return
  }
  func.func @transform_0(%arg0: i32) -> (i32, i32) {
    %c0_i32 = arith.constant 0 : i32
    %c0_i32_0 = arith.constant 0 : i32
    return %c0_i32, %arg0 : i32, i32
  }
  func.func @transform_1(%arg0: i32) -> (i32, i32) {
    %c0_i32 = arith.constant 0 : i32
    %c0_i32_0 = arith.constant 0 : i32
    %c0_i32_1 = arith.constant 0 : i32
    return %c0_i32, %c0_i32_0 : i32, i32
  }
  func.func @transform_2(%arg0: i32) -> (i32, i32) {
    %c0_i32 = arith.constant 0 : i32
    %c0_i32_0 = arith.constant 0 : i32
    %c0_i32_1 = arith.constant 0 : i32
    return %c0_i32, %c0_i32_0 : i32, i32
  }
  func.func @transform_3(%arg0: i32) -> (i32, i32) {
    %c0_i32 = arith.constant 0 : i32
    %c0_i32_0 = arith.constant 0 : i32
    %c0_i32_1 = arith.constant 0 : i32
    return %c0_i32, %c0_i32_0 : i32, i32
  }
  func.func @transform_4(%arg0: i32) -> (i32, i32) {
    %c0_i32 = arith.constant 0 : i32
    %c0_i32_0 = arith.constant 0 : i32
    %c0_i32_1 = arith.constant 0 : i32
    return %c0_i32, %c0_i32_0 : i32, i32
  }
  func.func @transform_5(%arg0: i32) -> (i32, i32) {
    %c0_i32 = arith.constant 0 : i32
    %c0_i32_0 = arith.constant 0 : i32
    %c0_i32_1 = arith.constant 0 : i32
    return %c0_i32, %c0_i32_0 : i32, i32
  }
  func.func @transform_6(%arg0: i32) -> (i32, i32) {
    %c0_i32 = arith.constant 0 : i32
    %c0_i32_0 = arith.constant 0 : i32
    %c0_i32_1 = arith.constant 0 : i32
    return %c0_i32, %c0_i32_0 : i32, i32
  }
  func.func @transform_7(%arg0: i32) -> (i32, i32) {
    %c0_i32 = arith.constant 0 : i32
    %c0_i32_0 = arith.constant 0 : i32
    return %c0_i32, %arg0 : i32, i32
  }
}

</mosaic_0001>

<llo_original>
// kernel: tpu_custom_call.1
$region0: #{tpu_custom_call.1}
  #allocation0 [shape = 'u32[]', space=smem, size = 0x4, offset = 0x4, fixed_abs, tag = 'smem constant byte address 0x4 - core index']
  #allocation1 [shape = 'u32[144,128]{1,0:T(1,128)}', space=vmem, size = 0x12000, scoped, tag = 'internal scratch']
  %s0 = inlined_call_operand.hbm [shape: f32[8,512], index: 0, kind: input, shape index: {}]
  %s1 = inlined_call_operand.vmem [shape: f32[8,72], index: 1, kind: input, shape index: {}]
  %s2 = inlined_call_operand.vmem [shape: f32[8,72], index: 2, kind: input, shape index: {}]
  %s3 = inlined_call_operand.vmem [shape: f32[8,8], index: 3, kind: input, shape index: {}]
  %s4 = inlined_call_operand.vmem [shape: f32[8,4], index: 4, kind: input, shape index: {}]
  %s5 = inlined_call_operand.vmem [shape: f32[8,1], index: 5, kind: input, shape index: {}]
  %s6 = inlined_call_operand.hbm [shape: f32[10,256], index: 6, kind: input, shape index: {}]
  %s7 = inlined_call_operand.hbm [shape: f32[8,512], index: 7, kind: output, shape index: {}]
  %s8 = sld [smem:[#allocation0]]
  $region69: #{tpu_custom_call.1} parent=0
    _
  %s10 = ssub.s32 1, %s8
  %s11 = scalar_select 0, %s10, %s8
  $region1: #{tpu_custom_call.1} parent=0
    #allocation2 [shape = 'u8[16384]{0}', space=vmem, size = 0x4000, scoped, tag = 'input window, operand 0']
    #allocation3 [shape = 's32[2]{0}', space=sflag, size = 0x8, scoped, tag = 'scoped memory for tpu_custom_call.1']
    #allocation4 [shape = 's32[2]{0}', space=sflag, size = 0x8, scoped, tag = 'scoped memory for tpu_custom_call.1']
    #allocation5 [shape = 'u8[16384]{0}', space=vmem, size = 0x4000, scoped, tag = 'input window, operand 6, single buffered']
    #allocation6 [shape = 's32[1]{0}', space=sflag, size = 0x4, scoped, tag = 'scoped memory for tpu_custom_call.1']
    #allocation7 [shape = 'u8[16384]{0}', space=vmem, size = 0x4000, scoped, tag = 'output window, operand 0']
    %12 = vsyncpa [#allocation3], 0
    %s13 = scalar_lea.sflag [#allocation3], 1
    %14 = vsyncpa %s13, 0
    %15 = vsyncpa [#allocation6], 0
    %16 = vsyncpa [#allocation4], 0
    %s17 = scalar_lea.sflag [#allocation4], 1
    %18 = vsyncpa %s17, 0
    loop: start=0, step=1, limit=4
    $region2: #{tpu_custom_call.1} parent=1 // loop_pre_header
      _
    $region3: #{tpu_custom_call.1} parent=1 // loop_header
      %s20 = sphi 0, %s24
      %p21 = scmp.ge.s32.totalorder %s20, 4
      %s30 = sphi 0, %s32
      %s33 = sphi 0, %s30
      %s34 = sphi 0, %s33
      %s50 = sphi 0, %s34
      %s54 = sphi 0, %s54
      %s56 = sphi 0, %s54
      %s57 = sphi 0, %s56
      %s71 = sphi 0, %s57
      %s75 = sphi 0, %s75
      %s77 = sphi 0, %s75
      %s78 = sphi 0, %s77
      %s92 = sphi 0, %s78
      %s96 = sphi 0, %s96
      %s98 = sphi 0, %s96
      %s99 = sphi 0, %s98
      %s113 = sphi 0, %s99
      %s117 = sphi 0, %s117
      %s119 = sphi 0, %s117
      %s120 = sphi 0, %s119
      %s134 = sphi 0, %s120
      %s138 = sphi 0, %s138
      %s140 = sphi 0, %s138
      %s141 = sphi 0, %s140
      %s155 = sphi 0, %s141
      %s159 = sphi 0, %s159
      %s161 = sphi 0, %s159
      %s162 = sphi 0, %s161
      %s176 = sphi 0, %s162
      %s182 = sphi 0, %s184
      %s185 = sphi 0, %s182
      %s186 = sphi 0, %s185
      %s202 = sphi 0, %s186
    $region4: #{tpu_custom_call.1} parent=1 // loop_header_branch
      %23 = sbr.rel (%p21) target = $region8
    $region5: #{tpu_custom_call.1} parent=1 // loop_body
      %s25 = ssub.s32 %s20, 1
      %s26 = ssub.s32 %s20, 2
      %s27 = sadd.s32 %s20, 1
      %s28 = ssub.s32 %s20, %s27
      %p29 = scmp.eq.s32.totalorder %s28, 0
      %s31 = sadd.s32 %s30, 1
      %s32 = scalar_select %p29, %s30, %s31
      %p35 = pneg %p29
      %p36 = scmp.eq.s32.totalorder %s20, 1
      %p37 = por %p35, %p36
      %p38 = scmp.ne.s32.totalorder %s30, %s33
      %p39 = scmp.eq.s32.totalorder %s20, 0
      %p40 = por %p38, %p39
      %p41 = scmp.ne.s32.totalorder %s30, %s33
      %p42 = scmp.eq.s32.totalorder %s25, 1
      %p43 = por %p41, %p42
      %p44 = scmp.ne.s32.totalorder %s33, %s34
      %p45 = scmp.eq.s32.totalorder %s25, 0
      %p46 = por %p44, %p45
      %p47 = scmp.ne.s32.totalorder %s33, %s34
      %p48 = scmp.eq.s32.totalorder %s26, 1
      %p49 = por %p47, %p48
      %p51 = scmp.ne.s32.totalorder %s34, %s50
      %p52 = scmp.eq.s32.totalorder %s26, 0
      %p53 = por %p51, %p52
      %s55 = sadd.s32 %s54, 1
      %p58 = scmp.eq.s32.totalorder %s20, 1
      %p59 = scmp.ne.s32.totalorder %s54, %s56
      %p60 = scmp.eq.s32.totalorder %s20, 0
      %p61 = por %p59, %p60
      %p62 = scmp.ne.s32.totalorder %s54, %s56
      %p63 = scmp.eq.s32.totalorder %s25, 1
      %p64 = por %p62, %p63
      %p65 = scmp.ne.s32.totalorder %s56, %s57
      %p66 = scmp.eq.s32.totalorder %s25, 0
      %p67 = por %p65, %p66
      %p68 = scmp.ne.s32.totalorder %s56, %s57
      %p69 = scmp.eq.s32.totalorder %s26, 1
      %p70 = por %p68, %p69
      %p72 = scmp.ne.s32.totalorder %s57, %s71
      %p73 = scmp.eq.s32.totalorder %s26, 0
      %p74 = por %p72, %p73
      %s76 = sadd.s32 %s75, 1
      %p79 = scmp.eq.s32.totalorder %s20, 1
      %p80 = scmp.ne.s32.totalorder %s75, %s77
      %p81 = scmp.eq.s32.totalorder %s20, 0
      %p82 = por %p80, %p81
      %p83 = scmp.ne.s32.totalorder %s75, %s77
      %p84 = scmp.eq.s32.totalorder %s25, 1
      %p85 = por %p83, %p84
      %p86 = scmp.ne.s32.totalorder %s77, %s78
      %p87 = scmp.eq.s32.totalorder %s25, 0
      %p88 = por %p86, %p87
      %p89 = scmp.ne.s32.totalorder %s77, %s78
      %p90 = scmp.eq.s32.totalorder %s26, 1
      %p91 = por %p89, %p90
      %p93 = scmp.ne.s32.totalorder %s78, %s92
      %p94 = scmp.eq.s32.totalorder %s26, 0
      %p95 = por %p93, %p94
      %s97 = sadd.s32 %s96, 1
      %p100 = scmp.eq.s32.totalorder %s20, 1
      %p101 = scmp.ne.s32.totalorder %s96, %s98
      %p102 = scmp.eq.s32.totalorder %s20, 0
      %p103 = por %p101, %p102
      %p104 = scmp.ne.s32.totalorder %s96, %s98
      %p105 = scmp.eq.s32.totalorder %s25, 1
      %p106 = por %p104, %p105
      %p107 = scmp.ne.s32.totalorder %s98, %s99
      %p108 = scmp.eq.s32.totalorder %s25, 0
      %p109 = por %p107, %p108
      %p110 = scmp.ne.s32.totalorder %s98, %s99
      %p111 = scmp.eq.s32.totalorder %s26, 1
      %p112 = por %p110, %p111
      %p114 = scmp.ne.s32.totalorder %s99, %s113
      %p115 = scmp.eq.s32.totalorder %s26, 0
      %p116 = por %p114, %p115
      %s118 = sadd.s32 %s117, 1
      %p121 = scmp.eq.s32.totalorder %s20, 1
      %p122 = scmp.ne.s32.totalorder %s117, %s119
      %p123 = scmp.eq.s32.totalorder %s20, 0
      %p124 = por %p122, %p123
      %p125 = scmp.ne.s32.totalorder %s117, %s119
      %p126 = scmp.eq.s32.totalorder %s25, 1
      %p127 = por %p125, %p126
      %p128 = scmp.ne.s32.totalorder %s119, %s120
      %p129 = scmp.eq.s32.totalorder %s25, 0
      %p130 = por %p128, %p129
      %p131 = scmp.ne.s32.totalorder %s119, %s120
      %p132 = scmp.eq.s32.totalorder %s26, 1
      %p133 = por %p131, %p132
      %p135 = scmp.ne.s32.totalorder %s120, %s134
      %p136 = scmp.eq.s32.totalorder %s26, 0
      %p137 = por %p135, %p136
      %s139 = sadd.s32 %s138, 1
      %p142 = scmp.eq.s32.totalorder %s20, 1
      %p143 = scmp.ne.s32.totalorder %s138, %s140
      %p144 = scmp.eq.s32.totalorder %s20, 0
      %p145 = por %p143, %p144
      %p146 = scmp.ne.s32.totalorder %s138, %s140
      %p147 = scmp.eq.s32.totalorder %s25, 1
      %p148 = por %p146, %p147
      %p149 = scmp.ne.s32.totalorder %s140, %s141
      %p150 = scmp.eq.s32.totalorder %s25, 0
      %p151 = por %p149, %p150
      %p152 = scmp.ne.s32.totalorder %s140, %s141
      %p153 = scmp.eq.s32.totalorder %s26, 1
      %p154 = por %p152, %p153
      %p156 = scmp.ne.s32.totalorder %s141, %s155
      %p157 = scmp.eq.s32.totalorder %s26, 0
      %p158 = por %p156, %p157
      %s160 = sadd.s32 %s159, 1
      %p163 = scmp.eq.s32.totalorder %s20, 1
      %p164 = scmp.ne.s32.totalorder %s159, %s161
      %p165 = scmp.eq.s32.totalorder %s20, 0
      %p166 = por %p164, %p165
      %p167 = scmp.ne.s32.totalorder %s159, %s161
      %p168 = scmp.eq.s32.totalorder %s25, 1
      %p169 = por %p167, %p168
      %p170 = scmp.ne.s32.totalorder %s161, %s162
      %p171 = scmp.eq.s32.totalorder %s25, 0
      %p172 = por %p170, %p171
      %p173 = scmp.ne.s32.totalorder %s161, %s162
      %p174 = scmp.eq.s32.totalorder %s26, 1
      %p175 = por %p173, %p174
      %p177 = scmp.ne.s32.totalorder %s162, %s176
      %p178 = scmp.eq.s32.totalorder %s26, 0
      %p179 = por %p177, %p178
      %s180 = ssub.s32 %s20, %s27
      %p181 = scmp.eq.s32.totalorder %s180, 0
      %s183 = sadd.s32 %s182, 1
      %s184 = scalar_select %p181, %s182, %s183
      %p187 = pneg %p181
      %p188 = scmp.eq.s32.totalorder %s20, 1
      %p189 = por %p187, %p188
      %p190 = scmp.ne.s32.totalorder %s182, %s185
      %p191 = scmp.eq.s32.totalorder %s20, 0
      %p192 = por %p190, %p191
      %p193 = scmp.ne.s32.totalorder %s182, %s185
      %p194 = scmp.eq.s32.totalorder %s25, 1
      %p195 = por %p193, %p194
      %p196 = scmp.ne.s32.totalorder %s185, %s186
      %p197 = scmp.eq.s32.totalorder %s25, 0
      %p198 = por %p196, %p197
      %p199 = scmp.ne.s32.totalorder %s185, %s186
      %p200 = scmp.eq.s32.totalorder %s26, 1
      %p201 = por %p199, %p200
      %p203 = scmp.ne.s32.totalorder %s186, %s202
      %p204 = scmp.eq.s32.totalorder %s26, 0
      %p205 = por %p203, %p204
      %p206 = scmp.le.s32.totalorder 1, %s20
      %p207 = scmp.lt.s32.totalorder %s20, 3
      %p208 = pnand %p206, %p207
      %p209 = pneg %p208
      // Predicated region
      $region9: #{tpu_custom_call.1} parent=5 // pred_check
        _
      $region10: #{tpu_custom_call.1} parent=5 // pred_check_branch
        %211 = sbr.rel (%p208) target = $region12
      $region11: #{tpu_custom_call.1} parent=5 // pred_region
        %s212 = ssub.s32 %s20, 1
        // Predicated region
        $region13: #{tpu_custom_call.1} parent=11 // pred_check
          %p213 = pneg %p67
        $region14: #{tpu_custom_call.1} parent=11 // pred_check_branch
          %215 = sbr.rel (%p213) target = $region16
        $region15: #{tpu_custom_call.1} parent=11 // pred_region
          _
        $region16: #{tpu_custom_call.1} parent=11 // pred_fallthru
          _
        // Predicated region
        $region17: #{tpu_custom_call.1} parent=11 // pred_check
          %p216 = pneg %p88
        $region18: #{tpu_custom_call.1} parent=11 // pred_check_branch
          %218 = sbr.rel (%p216) target = $region20
        $region19: #{tpu_custom_call.1} parent=11 // pred_region
          _
        $region20: #{tpu_custom_call.1} parent=11 // pred_fallthru
          _
        // Predicated region
        $region21: #{tpu_custom_call.1} parent=11 // pred_check
          %p219 = pneg %p109
        $region22: #{tpu_custom_call.1} parent=11 // pred_check_branch
          %221 = sbr.rel (%p219) target = $region24
        $region23: #{tpu_custom_call.1} parent=11 // pred_region
          _
        $region24: #{tpu_custom_call.1} parent=11 // pred_fallthru
          _
        // Predicated region
        $region25: #{tpu_custom_call.1} parent=11 // pred_check
          %p222 = pneg %p130
        $region26: #{tpu_custom_call.1} parent=11 // pred_check_branch
          %224 = sbr.rel (%p222) target = $region28
        $region27: #{tpu_custom_call.1} parent=11 // pred_region
          _
        $region28: #{tpu_custom_call.1} parent=11 // pred_fallthru
          _
        // Predicated region
        $region29: #{tpu_custom_call.1} parent=11 // pred_check
          %p225 = pneg %p151
        $region30: #{tpu_custom_call.1} parent=11 // pred_check_branch
          %227 = sbr.rel (%p225) target = $region32
        $region31: #{tpu_custom_call.1} parent=11 // pred_region
          _
        $region32: #{tpu_custom_call.1} parent=11 // pred_fallthru
          _
        // Predicated region
        $region33: #{tpu_custom_call.1} parent=11 // pred_check
          %p228 = pneg %p172
        $region34: #{tpu_custom_call.1} parent=11 // pred_check_branch
          %230 = sbr.rel (%p228) target = $region36
        $region35: #{tpu_custom_call.1} parent=11 // pred_region
          %s232 = ssub.s32 512, 512
          %233 = vsyncadd [#allocation6], %s232
          %s234 = sshll.u32 [#allocation5], 4
          %s235 = int_to_ptr.vmem [resolvable:$true] %s234
          %240 = dma.hbm_to_vmem [thread:$0]  %s6, 512, %s235, [#allocation6], 256, 256, 16
        $region36: #{tpu_custom_call.1} parent=11 // pred_fallthru
          _
      $region12: #{tpu_custom_call.1} parent=5 // pred_fallthru
        _
      %p241 = scmp.lt.s32.totalorder %s20, 2
      // Predicated region
      $region37: #{tpu_custom_call.1} parent=5 // pred_check
        %p242 = pneg %p241
      $region38: #{tpu_custom_call.1} parent=5 // pred_check_branch
        %244 = sbr.rel (%p242) target = $region40
      $region39: #{tpu_custom_call.1} parent=5 // pred_region
        // Predicated region
        $region41: #{tpu_custom_call.1} parent=39 // pred_check
          %p245 = pneg %p40
        $region42: #{tpu_custom_call.1} parent=39 // pred_check_branch
          %247 = sbr.rel (%p245) target = $region44
        $region43: #{tpu_custom_call.1} parent=39 // pred_region
          %s248 = sand.u32 %s30, 1
          %s249 = scalar_lea.sflag [#allocation3], %s248
          %s250 = sand.u32 %s30, 1
          %s251 = smul.addr %s250, 16
          %s252 = scalar_lea.vmem [#allocation2], %s251
          %s253 = smul.u32 2, %s20
          %s255 = ssub.s32 256, 256
          %256 = vsyncadd %s249, %s255
          %s257 = smul.addr %s253, 128
          %s258 = scalar_lea.hbm %s0, %s257
          %s260 = sshll.u32 %s252, 4
          %s261 = int_to_ptr.vmem [resolvable:$true] %s260
          %263 = dma.hbm_to_vmem [thread:$0]  %s258, 256, %s261, %s249
        $region44: #{tpu_custom_call.1} parent=39 // pred_fallthru
          _
      $region40: #{tpu_custom_call.1} parent=5 // pred_fallthru
        _
      %p264 = scmp.le.s32.totalorder 1, %s20
      %p265 = scmp.lt.s32.totalorder %s20, 3
      %p266 = pnand %p264, %p265
      %p267 = pneg %p266
      // Predicated region
      $region45: #{tpu_custom_call.1} parent=5 // pred_check
        _
      $region46: #{tpu_custom_call.1} parent=5 // pred_check_branch
        %269 = sbr.rel (%p266) target = $region48
      $region47: #{tpu_custom_call.1} parent=5 // pred_region
        %s270 = ssub.s32 %s20, 1
        %s271 = sand.u32 %s33, 1
        %s272 = scalar_lea.sflag [#allocation3], %s271
        %s273 = sand.u32 %s33, 1
        %s274 = smul.addr %s273, 16
        %s275 = scalar_lea.vmem [#allocation2], %s274
        // Predicated region
        $region49: #{tpu_custom_call.1} parent=47 // pred_check
          %p276 = pneg %p46
        $region50: #{tpu_custom_call.1} parent=47 // pred_check_branch
          %278 = sbr.rel (%p276) target = $region52
        $region51: #{tpu_custom_call.1} parent=47 // pred_region
          %279 = dma.done %s272, 256
        $region52: #{tpu_custom_call.1} parent=47 // pred_fallthru
          _
        // Predicated region
        $region53: #{tpu_custom_call.1} parent=47 // pred_check
          %p280 = pneg %p172
        $region54: #{tpu_custom_call.1} parent=47 // pred_check_branch
          %282 = sbr.rel (%p280) target = $region56
        $region55: #{tpu_custom_call.1} parent=47 // pred_region
          %283 = dma.done [#allocation6], 512
        $region56: #{tpu_custom_call.1} parent=47 // pred_fallthru
          _
        %s284 = sand.u32 %s33, 1
        %s285 = scalar_lea.sflag [#allocation3], %s284
        %s286 = sand.u32 %s33, 1
        %s287 = smul.addr %s286, 16
        %s288 = scalar_lea.vmem [#allocation2], %s287
        %p289 = pneg %p46
        %p290 = pneg %p43
        %p291 = pneg %p67
        %p292 = pneg %p64
        %p293 = pneg %p88
        %p294 = pneg %p85
        %p295 = pneg %p109
        %p296 = pneg %p106
        %p297 = pneg %p130
        %p298 = pneg %p127
        %p299 = pneg %p151
        %p300 = pneg %p148
        %p301 = pneg %p172
        %p302 = pneg %p169
        %p303 = pneg %p198
        %p304 = pneg %p195
        %s305 = sand.u32 %s185, 1
        %s306 = scalar_lea.sflag [#allocation4], %s305
        %s307 = sand.u32 %s185, 1
        %s308 = smul.addr %s307, 16
        %s309 = scalar_lea.vmem [#allocation7], %s308
        %s310 = smul.u32 2, %s25
        %s311 = smul.u32 2, %s25
        %v312 = vld [vmem:[%s275] sm:$0xff]
        %v313 = vld [vmem:[%s275 + $0x8] sm:$0xff]
        %v314 = vld [vmem:[#allocation5] sm:$0xff]
        %v315 = vld [vmem:[#allocation5 + $0x8] sm:$0xff]
        %v316 = vld [vmem:[#allocation5 + $0x10] sm:$0x3]
        %v317 = vld [vmem:[#allocation5 + $0x18] sm:$0x3]
        %v318 = vld [vmem:[%s4] sm:$0xff]
        %v319 = vld [vmem:[%s1] sm:$0xff]
        %320 = vrot.lane.b32.xlu0 %v312, 17
        %v321 = vpop.permute.xlu0 %320
        %322 = vrot.lane.b32.xlu0 %v313, 17
        %v323 = vpop.permute.xlu0 %322
        %v324 = vlaneseq
        %v325 = vand.u32 %v324, 127
        %vm326 = vcmp.lt.s32.totalorder %v325, 17
        %v327 = vsel %vm326, %v321, %v323
        %v328 = vsel %vm326, %v323, %v321
        %v329 = vlaneseq
        %v330 = vshrl.u32 %v329, 7
        %v331 = vsub.s32 0, %v330
        %v332 = vrot.slane %v314, %v331
        %v333 = vlaneseq
        %v334 = vshrl.u32 %v333, 7
        %v335 = vsub.s32 0, %v334
        %v336 = vrot.slane %v315, %v335
        %v337 = vmul.f32 %v328, %v332
        %v338 = vmul.f32 %v327, %v336
        %339 = vrot.lane.b32.xlu0 %v312, 16
        %v340 = vpop.permute.xlu0 %339
        %341 = vrot.lane.b32.xlu0 %v313, 16
        %v342 = vpop.permute.xlu0 %341
        %vm343 = vcmp.lt.s32.totalorder %v325, 16
        %v344 = vsel %vm343, %v340, %v342
        %v345 = vsel %vm343, %v342, %v340
        %v346 = vlaneseq
        %v347 = vshrl.u32 %v346, 7
        %v348 = vsub.s32 1, %v347
        %v349 = vrot.slane %v314, %v348
        %v350 = vlaneseq
        %v351 = vshrl.u32 %v350, 7
        %v352 = vsub.s32 1, %v351
        %v353 = vrot.slane %v315, %v352
        %v354 = vmul.f32 %v345, %v349
        %v355 = vmul.f32 %v344, %v353
        %356 = vrot.lane.b32.xlu0 %v312, 15
        %v357 = vpop.permute.xlu0 %356
        %358 = vrot.lane.b32.xlu0 %v313, 15
        %v359 = vpop.permute.xlu0 %358
        %vm360 = vcmp.lt.s32.totalorder %v325, 15
        %v361 = vsel %vm360, %v357, %v359
        %v362 = vsel %vm360, %v359, %v357
        %v363 = vlaneseq
        %v364 = vshrl.u32 %v363, 7
        %v365 = vsub.s32 2, %v364
        %v366 = vrot.slane %v314, %v365
        %v367 = vlaneseq
        %v368 = vshrl.u32 %v367, 7
        %v369 = vsub.s32 2, %v368
        %v370 = vrot.slane %v315, %v369
        %v371 = vmul.f32 %v362, %v366
        %v372 = vmul.f32 %v361, %v370
        %373 = vrot.lane.b32.xlu0 %v312, 1
        %v374 = vpop.permute.xlu0 %373
        %375 = vrot.lane.b32.xlu0 %v313, 1
        %v376 = vpop.permute.xlu0 %375
        %vm377 = vcmp.lt.s32.totalorder %v325, 1
        %v378 = vsel %vm377, %v374, %v376
        %v379 = vsel %vm377, %v376, %v374
        %v380 = vlaneseq
        %v381 = vshrl.u32 %v380, 7
        %v382 = vsub.s32 3, %v381
        %v383 = vrot.slane %v314, %v382
        %v384 = vlaneseq
        %v385 = vshrl.u32 %v384, 7
        %v386 = vsub.s32 3, %v385
        %v387 = vrot.slane %v315, %v386
        %v388 = vmul.f32 %v379, %v383
        %v389 = vmul.f32 %v378, %v387
        %v390 = vlaneseq
        %v391 = vshrl.u32 %v390, 7
        %v392 = vsub.s32 4, %v391
        %v393 = vrot.slane %v314, %v392
        %v394 = vlaneseq
        %v395 = vshrl.u32 %v394, 7
        %v396 = vsub.s32 4, %v395
        %v397 = vrot.slane %v315, %v396
        %v398 = vmul.f32 %v312, %v393
        %v399 = vmul.f32 %v313, %v397
        %400 = vrot.lane.b32.xlu0 %v312, 127
        %v401 = vpop.permute.xlu0 %400
        %402 = vrot.lane.b32.xlu0 %v313, 127
        %v403 = vpop.permute.xlu0 %402
        %vm404 = vcmp.lt.s32.totalorder %v325, 127
        %v405 = vsel %vm404, %v401, %v403
        %v406 = vsel %vm404, %v403, %v401
        %v407 = vlaneseq
        %v408 = vshrl.u32 %v407, 7
        %v409 = vsub.s32 5, %v408
        %v410 = vrot.slane %v314, %v409
        %v411 = vlaneseq
        %v412 = vshrl.u32 %v411, 7
        %v413 = vsub.s32 5, %v412
        %v414 = vrot.slane %v315, %v413
        %v415 = vmul.f32 %v405, %v410
        %v416 = vmul.f32 %v406, %v414
        %417 = vrot.lane.b32.xlu0 %v312, 113
        %v418 = vpop.permute.xlu0 %417
        %419 = vrot.lane.b32.xlu0 %v313, 113
        %v420 = vpop.permute.xlu0 %419
        %vm421 = vcmp.lt.s32.totalorder %v325, 113
        %v422 = vsel %vm421, %v418, %v420
        %v423 = vsel %vm421, %v420, %v418
        %v424 = vlaneseq
        %v425 = vshrl.u32 %v424, 7
        %v426 = vsub.s32 6, %v425
        %v427 = vrot.slane %v314, %v426
        %v428 = vlaneseq
        %v429 = vshrl.u32 %v428, 7
        %v430 = vsub.s32 6, %v429
        %v431 = vrot.slane %v315, %v430
        %v432 = vmul.f32 %v422, %v427
        %v433 = vmul.f32 %v423, %v431
        %434 = vrot.lane.b32.xlu0 %v312, 112
        %v435 = vpop.permute.xlu0 %434
        %436 = vrot.lane.b32.xlu0 %v313, 112
        %v437 = vpop.permute.xlu0 %436
        %vm438 = vcmp.lt.s32.totalorder %v325, 112
        %v439 = vsel %vm438, %v435, %v437
        %v440 = vsel %vm438, %v437, %v435
        %v441 = vlaneseq
        %v442 = vshrl.u32 %v441, 7
        %v443 = vsub.s32 7, %v442
        %v444 = vrot.slane %v314, %v443
        %v445 = vlaneseq
        %v446 = vshrl.u32 %v445, 7
        %v447 = vsub.s32 7, %v446
        %v448 = vrot.slane %v315, %v447
        %v449 = vmul.f32 %v439, %v444
        %v450 = vmul.f32 %v440, %v448
        %451 = vrot.lane.b32.xlu0 %v312, 111
        %v452 = vpop.permute.xlu0 %451
        %453 = vrot.lane.b32.xlu0 %v313, 111
        %v454 = vpop.permute.xlu0 %453
        %vm455 = vcmp.lt.s32.totalorder %v325, 111
        %v456 = vsel %vm455, %v452, %v454
        %v457 = vsel %vm455, %v454, %v452
        %v458 = vlaneseq
        %v459 = vshrl.u32 %v458, 7
        %v460 = vsub.s32 0, %v459
        %v461 = vrot.slane %v316, %v460
        %v462 = vlaneseq
        %v463 = vshrl.u32 %v462, 7
        %v464 = vsub.s32 0, %v463
        %v465 = vrot.slane %v317, %v464
        %v466 = vmul.f32 %v456, %v461
        %v467 = vmul.f32 %v457, %v465
        %469 = vset.pattern.permute.xlu0 0
        %470 = vperm.xlu0 %469, %v318
        %v471 = vpop.permute.xlu0 %470
        %vm473 = vcmask 588800
        %v475 = vsel %vm473, %v319, 0
        %477 = vmatprep.subr.mxu0 0.0
        %478 = vmatpush1.msra.mxu0 0.0
        %479 = vmatprep.subr.mxu0 0.0
        %480 = vmatpush1.msra.mxu0 0.0
        %481 = vmatprep.subr.mxu0 0.0
        %482 = vmatpush1.msra.mxu0 0.0
        %483 = vmatprep.subr.mxu0 0.0
        %484 = vmatpush1.msra.mxu0 0.0
        %485 = vmatprep.subr.mxu0 0.0
        %486 = vmatpush1.msra.mxu0 0.0
        %487 = vmatprep.subr.mxu0 0.0
        %488 = vmatpush1.msra.mxu0 0.0
        %489 = vmatprep.subr.mxu0 0.0
        %490 = vmatpush1.msra.mxu0 0.0
        %491 = vmatprep.subr.mxu0 %v467
        %492 = vmatpush1.msra.mxu0 %v466
        %493 = vmatprep.subr.mxu0 %v450
        %494 = vmatpush1.msra.mxu0 %v449
        %495 = vmatprep.subr.mxu0 %v433
        %496 = vmatpush1.msra.mxu0 %v432
        %497 = vmatprep.subr.mxu0 %v416
        %498 = vmatpush1.msra.mxu0 %v415
        %499 = vmatprep.subr.mxu0 %v399
        %500 = vmatpush1.msra.mxu0 %v398
        %501 = vmatprep.subr.mxu0 %v389
        %502 = vmatpush1.msra.mxu0 %v388
        %503 = vmatprep.subr.mxu0 %v372
        %504 = vmatpush1.msra.mxu0 %v371
        %505 = vmatprep.subr.mxu0 %v355
        %506 = vmatpush1.msra.mxu0 %v354
        %507 = vmatprep.subr.mxu0 %v338
        %508 = vmatpush1.msra.mxu0 %v337
        %509 = vmatprep.subr.mxu0 0.0
        %510 = vmatpush2.msra.mxu0 0.0
        %511 = vmatprep.subr.mxu0 0.0
        %512 = vmatpush2.msra.mxu0 0.0
        %513 = vmatprep.subr.mxu0 0.0
        %514 = vmatpush2.msra.mxu0 0.0
        %515 = vmatprep.subr.mxu0 0.0
        %516 = vmatpush2.msra.mxu0 0.0
        %517 = vmatprep.subr.mxu0 0.0
        %518 = vmatpush2.msra.mxu0 0.0
        %519 = vmatprep.subr.mxu0 0.0
        %520 = vmatpush2.msra.mxu0 0.0
        %521 = vmatprep.subr.mxu0 0.0
        %522 = vmatpush2.msra.mxu0 0.0
        %523 = vmatprep.subr.mxu0 0.0
        %524 = vmatpush2.msra.mxu0 0.0
        %525 = vmatprep.subr.mxu0 0.0
        %526 = vmatpush2.msra.mxu0 0.0
        %527 = vmatprep.subr.mxu0 0.0
        %528 = vmatpush2.msra.mxu0 0.0
        %529 = vmatprep.subr.mxu0 0.0
        %530 = vmatpush2.msra.mxu0 0.0
        %531 = vmatprep.subr.mxu0 0.0
        %532 = vmatpush2.msra.mxu0 0.0
        %533 = vmatprep.subr.mxu0 0.0
        %534 = vmatpush2.msra.mxu0 0.0
        %535 = vmatprep.subr.mxu0 0.0
        %536 = vmatpush2.msra.mxu0 0.0
        %537 = vmatprep.subr.mxu0 0.0
        %538 = vmatpush2.msra.mxu0 0.0
        %539 = vmatprep.subr.mxu0 0.0
        %540 = vmatpush2.msra.mxu0 0.0
        %541 = vmatprep.mubr.f32.mxu0 0.0
        %542 = vmatmul.mubr.f32.gmra.mxu0 %v475
        %v543 = vpop.f32.mrf.mxu0
        %v544 = vadd.f32 %v471, %v543
        %v545 = vpop.f32.mrf.mxu0
        %v546 = vadd.f32 %v471, %v545
        %547 = vdwg.mxu0
        %v548 = vmax.f32 %v544, 0.0
        %v549 = vmax.f32 %v546, 0.0
        %v550 = vld [vmem:[%s2] sm:$0xff]
        %551 = vrot.lane.b32.xlu0 %v548, 17
        %v552 = vpop.permute.xlu0 %551
        %553 = vrot.lane.b32.xlu0 %v549, 17
        %v554 = vpop.permute.xlu0 %553
        %v555 = vsel %vm326, %v552, %v554
        %v556 = vsel %vm326, %v554, %v552
        %v557 = vmul.f32 %v556, %v332
        %v558 = vmul.f32 %v555, %v336
        %559 = vrot.lane.b32.xlu0 %v548, 16
        %v560 = vpop.permute.xlu0 %559
        %561 = vrot.lane.b32.xlu0 %v549, 16
        %v562 = vpop.permute.xlu0 %561
        %v563 = vsel %vm343, %v560, %v562
        %v564 = vsel %vm343, %v562, %v560
        %v565 = vmul.f32 %v564, %v349
        %v566 = vmul.f32 %v563, %v353
        %567 = vrot.lane.b32.xlu0 %v548, 15
        %v568 = vpop.permute.xlu0 %567
        %569 = vrot.lane.b32.xlu0 %v549, 15
        %v570 = vpop.permute.xlu0 %569
        %v571 = vsel %vm360, %v568, %v570
        %v572 = vsel %vm360, %v570, %v568
        %v573 = vmul.f32 %v572, %v366
        %v574 = vmul.f32 %v571, %v370
        %575 = vrot.lane.b32.xlu0 %v548, 1
        %v576 = vpop.permute.xlu0 %575
        %577 = vrot.lane.b32.xlu0 %v549, 1
        %v578 = vpop.permute.xlu0 %577
        %v579 = vsel %vm377, %v576, %v578
        %v580 = vsel %vm377, %v578, %v576
        %v581 = vmul.f32 %v580, %v383
        %v582 = vmul.f32 %v579, %v387
        %v583 = vmul.f32 %v548, %v393
        %v584 = vmul.f32 %v549, %v397
        %585 = vrot.lane.b32.xlu0 %v548, 127
        %v586 = vpop.permute.xlu0 %585
        %587 = vrot.lane.b32.xlu0 %v549, 127
        %v588 = vpop.permute.xlu0 %587
        %v589 = vsel %vm404, %v586, %v588
        %v590 = vsel %vm404, %v588, %v586
        %v591 = vmul.f32 %v589, %v410
        %v592 = vmul.f32 %v590, %v414
        %593 = vrot.lane.b32.xlu0 %v548, 113
        %v594 = vpop.permute.xlu0 %593
        %595 = vrot.lane.b32.xlu0 %v549, 113
        %v596 = vpop.permute.xlu0 %595
        %v597 = vsel %vm421, %v594, %v596
        %v598 = vsel %vm421, %v596, %v594
        %v599 = vmul.f32 %v597, %v427
        %v600 = vmul.f32 %v598, %v431
        %601 = vrot.lane.b32.xlu0 %v548, 112
        %v602 = vpop.permute.xlu0 %601
        %603 = vrot.lane.b32.xlu0 %v549, 112
        %v604 = vpop.permute.xlu0 %603
        %v605 = vsel %vm438, %v602, %v604
        %v606 = vsel %vm438, %v604, %v602
        %v607 = vmul.f32 %v605, %v444
        %v608 = vmul.f32 %v606, %v448
        %609 = vrot.lane.b32.xlu0 %v548, 111
        %v610 = vpop.permute.xlu0 %609
        %611 = vrot.lane.b32.xlu0 %v549, 111
        %v612 = vpop.permute.xlu0 %611
        %v613 = vsel %vm455, %v610, %v612
        %v614 = vsel %vm455, %v612, %v610
        %v615 = vmul.f32 %v613, %v461
        %v616 = vmul.f32 %v614, %v465
        %617 = vset.pattern.permute.xlu0 1
        %618 = vperm.xlu0 %617, %v318
        %v619 = vpop.permute.xlu0 %618
        %v622 = vsel %vm473, %v550, 0
        %624 = vmatprep.subr.mxu0 0.0
        %625 = vmatpush1.msra.mxu0 0.0
        %626 = vmatprep.subr.mxu0 0.0
        %627 = vmatpush1.msra.mxu0 0.0
        %628 = vmatprep.subr.mxu0 0.0
        %629 = vmatpush1.msra.mxu0 0.0
        %630 = vmatprep.subr.mxu0 0.0
        %631 = vmatpush1.msra.mxu0 0.0
        %632 = vmatprep.subr.mxu0 0.0
        %633 = vmatpush1.msra.mxu0 0.0
        %634 = vmatprep.subr.mxu0 0.0
        %635 = vmatpush1.msra.mxu0 0.0
        %636 = vmatprep.subr.mxu0 0.0
        %637 = vmatpush1.msra.mxu0 0.0
        %638 = vmatprep.subr.mxu0 %v616
        %639 = vmatpush1.msra.mxu0 %v615
        %640 = vmatprep.subr.mxu0 %v608
        %641 = vmatpush1.msra.mxu0 %v607
        %642 = vmatprep.subr.mxu0 %v600
        %643 = vmatpush1.msra.mxu0 %v599
        %644 = vmatprep.subr.mxu0 %v592
        %645 = vmatpush1.msra.mxu0 %v591
        %646 = vmatprep.subr.mxu0 %v584
        %647 = vmatpush1.msra.mxu0 %v583
        %648 = vmatprep.subr.mxu0 %v582
        %649 = vmatpush1.msra.mxu0 %v581
        %650 = vmatprep.subr.mxu0 %v574
        %651 = vmatpush1.msra.mxu0 %v573
        %652 = vmatprep.subr.mxu0 %v566
        %653 = vmatpush1.msra.mxu0 %v565
        %654 = vmatprep.subr.mxu0 %v558
        %655 = vmatpush1.msra.mxu0 %v557
        %656 = vmatprep.subr.mxu0 0.0
        %657 = vmatpush2.msra.mxu0 0.0
        %658 = vmatprep.subr.mxu0 0.0
        %659 = vmatpush2.msra.mxu0 0.0
        %660 = vmatprep.subr.mxu0 0.0
        %661 = vmatpush2.msra.mxu0 0.0
        %662 = vmatprep.subr.mxu0 0.0
        %663 = vmatpush2.msra.mxu0 0.0
        %664 = vmatprep.subr.mxu0 0.0
        %665 = vmatpush2.msra.mxu0 0.0
        %666 = vmatprep.subr.mxu0 0.0
        %667 = vmatpush2.msra.mxu0 0.0
        %668 = vmatprep.subr.mxu0 0.0
        %669 = vmatpush2.msra.mxu0 0.0
        %670 = vmatprep.subr.mxu0 0.0
        %671 = vmatpush2.msra.mxu0 0.0
        %672 = vmatprep.subr.mxu0 0.0
        %673 = vmatpush2.msra.mxu0 0.0
        %674 = vmatprep.subr.mxu0 0.0
        %675 = vmatpush2.msra.mxu0 0.0
        %676 = vmatprep.subr.mxu0 0.0
        %677 = vmatpush2.msra.mxu0 0.0
        %678 = vmatprep.subr.mxu0 0.0
        %679 = vmatpush2.msra.mxu0 0.0
        %680 = vmatprep.subr.mxu0 0.0
        %681 = vmatpush2.msra.mxu0 0.0
        %682 = vmatprep.subr.mxu0 0.0
        %683 = vmatpush2.msra.mxu0 0.0
        %684 = vmatprep.subr.mxu0 0.0
        %685 = vmatpush2.msra.mxu0 0.0
        %686 = vmatprep.subr.mxu0 0.0
        %687 = vmatpush2.msra.mxu0 0.0
        %688 = vmatprep.mubr.f32.mxu0 0.0
        %689 = vmatmul.mubr.f32.gmra.mxu0 %v622
        %v690 = vpop.f32.mrf.mxu0
        %v691 = vadd.f32 %v619, %v690
        %v692 = vpop.f32.mrf.mxu0
        %v693 = vadd.f32 %v619, %v692
        %694 = vdwg.mxu0
        %v695 = vadd.f32 %v691, %v312
        %v696 = vadd.f32 %v693, %v313
        %v697 = vmax.f32 %v695, 0.0
        %v698 = vmax.f32 %v696, 0.0
        %699 = vset.pattern.permute.xlu0 2
        %700 = vperm.xlu0 %699, %v318
        %v701 = vpop.permute.xlu0 %700
        %v703 = vmul.f32 %v697, %v701
        %v704 = vmul.f32 %v698, %v701
        %705 = vset.pattern.permute.xlu0 3
        %706 = vperm.xlu0 %705, %v318
        %v707 = vpop.permute.xlu0 %706
        %v709 = vadd.f32 %v703, %v707
        %v710 = vadd.f32 %v704, %v707
        %v711 = vmax.f32 %v709, 0.0
        %v712 = vmax.f32 %v710, 0.0
        %v713 = vld [vmem:[%s3] sm:$0xff]
        %v714 = vld [vmem:[%s5] sm:$0xff]
        %716 = vset.pattern.permute.xlu0 0
        %717 = vperm.xlu0 %716, %v714
        %v718 = vpop.permute.xlu0 %717
        %vm720 = vcmask 64512
        %v722 = vsel %vm720, %v713, 0
        %724 = vmatprep.subr.mxu0 0.0
        %725 = vmatpush1.msra.mxu0 0.0
        %726 = vmatprep.subr.mxu0 0.0
        %727 = vmatpush1.msra.mxu0 0.0
        %728 = vmatprep.subr.mxu0 0.0
        %729 = vmatpush1.msra.mxu0 0.0
        %730 = vmatprep.subr.mxu0 0.0
        %731 = vmatpush1.msra.mxu0 0.0
        %732 = vmatprep.subr.mxu0 0.0
        %733 = vmatpush1.msra.mxu0 0.0
        %734 = vmatprep.subr.mxu0 0.0
        %735 = vmatpush1.msra.mxu0 0.0
        %736 = vmatprep.subr.mxu0 0.0
        %737 = vmatpush1.msra.mxu0 0.0
        %738 = vmatprep.subr.mxu0 0.0
        %739 = vmatpush1.msra.mxu0 0.0
        %740 = vmatprep.subr.mxu0 0.0
        %741 = vmatpush1.msra.mxu0 0.0
        %742 = vmatprep.subr.mxu0 0.0
        %743 = vmatpush1.msra.mxu0 0.0
        %744 = vmatprep.subr.mxu0 0.0
        %745 = vmatpush1.msra.mxu0 0.0
        %746 = vmatprep.subr.mxu0 0.0
        %747 = vmatpush1.msra.mxu0 0.0
        %748 = vmatprep.subr.mxu0 0.0
        %749 = vmatpush1.msra.mxu0 0.0
        %750 = vmatprep.subr.mxu0 0.0
        %751 = vmatpush1.msra.mxu0 0.0
        %752 = vmatprep.subr.mxu0 0.0
        %753 = vmatpush1.msra.mxu0 0.0
        %754 = vmatprep.subr.mxu0 %v712
        %755 = vmatpush1.msra.mxu0 %v711
        %756 = vmatprep.subr.mxu0 0.0
        %757 = vmatpush2.msra.mxu0 0.0
        %758 = vmatprep.subr.mxu0 0.0
        %759 = vmatpush2.msra.mxu0 0.0
        %760 = vmatprep.subr.mxu0 0.0
        %761 = vmatpush2.msra.mxu0 0.0
        %762 = vmatprep.subr.mxu0 0.0
        %763 = vmatpush2.msra.mxu0 0.0
        %764 = vmatprep.subr.mxu0 0.0
        %765 = vmatpush2.msra.mxu0 0.0
        %766 = vmatprep.subr.mxu0 0.0
        %767 = vmatpush2.msra.mxu0 0.0
        %768 = vmatprep.subr.mxu0 0.0
        %769 = vmatpush2.msra.mxu0 0.0
        %770 = vmatprep.subr.mxu0 0.0
        %771 = vmatpush2.msra.mxu0 0.0
        %772 = vmatprep.subr.mxu0 0.0
        %773 = vmatpush2.msra.mxu0 0.0
        %774 = vmatprep.subr.mxu0 0.0
        %775 = vmatpush2.msra.mxu0 0.0
        %776 = vmatprep.subr.mxu0 0.0
        %777 = vmatpush2.msra.mxu0 0.0
        %778 = vmatprep.subr.mxu0 0.0
        %779 = vmatpush2.msra.mxu0 0.0
        %780 = vmatprep.subr.mxu0 0.0
        %781 = vmatpush2.msra.mxu0 0.0
        %782 = vmatprep.subr.mxu0 0.0
        %783 = vmatpush2.msra.mxu0 0.0
        %784 = vmatprep.subr.mxu0 0.0
        %785 = vmatpush2.msra.mxu0 0.0
        %786 = vmatprep.subr.mxu0 0.0
        %787 = vmatpush2.msra.mxu0 0.0
        %788 = vmatprep.mubr.f32.mxu0 0.0
        %789 = vmatmul.mubr.f32.gmra.mxu0 %v722
        %v790 = vpop.f32.mrf.mxu0
        %v791 = vadd.f32 %v718, %v790
        %v792 = vpop.f32.mrf.mxu0
        %v793 = vadd.f32 %v718, %v792
        %794 = vdwg.mxu0
        %vm795 = vcmp.gt.f32.partialorder %v791, 0.0
        %vm796 = vcmp.gt.f32.partialorder %v793, 0.0
        %v797 = vadd.f32 %v791, 1.0
        %v798 = vadd.f32 %v793, 1.0
        %v799 = vmul.f32 %v791, 1.442695
        %v800 = vpow.pop %v799
        %v801 = vmul.f32 %v793, 1.442695
        %v802 = vpow.pop %v801
        %v803 = vsel %vm795, %v797, %v800
        %v804 = vsel %vm796, %v798, %v802
        %v805 = vlaneseq
        %v806 = vshrl.u32 %v805, 7
        %v807 = vsub.s32 1, %v806
        %v808 = vrot.slane %v316, %v807
        %v809 = vlaneseq
        %v810 = vshrl.u32 %v809, 7
        %v811 = vsub.s32 1, %v810
        %v812 = vrot.slane %v317, %v811
        %v813 = vmul.f32 %v803, %v808
        %v814 = vmul.f32 %v804, %v812
        %815 = vst [vmem:[%s309] sm:$0xff] %v813
        %816 = vst [vmem:[%s309 + $0x8] sm:$0xff] %v814
        %s817 = sand.u32 %s185, 1
        %s818 = scalar_lea.sflag [#allocation4], %s817
        %s819 = sand.u32 %s185, 1
        %s820 = smul.addr %s819, 16
        %s821 = scalar_lea.vmem [#allocation7], %s820
        // Predicated region
        $region57: #{tpu_custom_call.1} parent=47 // pred_check
          %p822 = pneg %p195
        $region58: #{tpu_custom_call.1} parent=47 // pred_check_branch
          %824 = sbr.rel (%p822) target = $region60
        $region59: #{tpu_custom_call.1} parent=47 // pred_region
          %s825 = smul.u32 2, %s25
          %s827 = ssub.s32 256, 256
          %828 = vsyncadd %s818, %s827
          %s829 = smul.addr %s825, 128
          %s830 = scalar_lea.hbm %s7, %s829
          %s832 = sshll.u32 %s821, 4
          %s833 = int_to_ptr.vmem [resolvable:$true] %s832
          %835 = dma.vmem_to_hbm [thread:$0]  %s833, 256, %s830, %s818
        $region60: #{tpu_custom_call.1} parent=47 // pred_fallthru
          _
      $region48: #{tpu_custom_call.1} parent=5 // pred_fallthru
        _
      %p836 = scmp.le.s32.totalorder 2, %s20
      // Predicated region
      $region61: #{tpu_custom_call.1} parent=5 // pred_check
        %p837 = pneg %p836
      $region62: #{tpu_custom_call.1} parent=5 // pred_check_branch
        %839 = sbr.rel (%p837) target = $region64
      $region63: #{tpu_custom_call.1} parent=5 // pred_region
        %s840 = ssub.s32 %s20, 2
        // Predicated region
        $region65: #{tpu_custom_call.1} parent=63 // pred_check
          %p841 = pneg %p201
        $region66: #{tpu_custom_call.1} parent=63 // pred_check_branch
          %843 = sbr.rel (%p841) target = $region68
        $region67: #{tpu_custom_call.1} parent=63 // pred_region
          %s844 = sand.u32 %s186, 1
          %s845 = scalar_lea.sflag [#allocation4], %s844
          %s846 = sand.u32 %s186, 1
          %s847 = smul.addr %s846, 16
          %s848 = scalar_lea.vmem [#allocation7], %s847
          %849 = dma.done %s845, 256
        $region68: #{tpu_custom_call.1} parent=63 // pred_fallthru
          _
      $region64: #{tpu_custom_call.1} parent=5 // pred_fallthru
        _
    $region6: #{tpu_custom_call.1} parent=1 // loop_footer
      %s24 = sadd.s32 1, %s20
    $region7: #{tpu_custom_call.1} parent=1 // loop_footer_branch
      %19 = sbr.rel target = $region3
    $region8: #{tpu_custom_call.1} parent=1 // loop_exit
      _
    %850 = vsyncpa [#allocation3], 1
    %s851 = scalar_lea.sflag [#allocation3], 1
    %852 = vsyncpa %s851, 1
    %853 = vsyncpa [#allocation6], 1
    %854 = vsyncpa [#allocation4], 1
    %s855 = scalar_lea.sflag [#allocation4], 1
    %856 = vsyncpa %s855, 1

</llo_original>
